<compile_context>
chip_gen: v6e
topology: v6e:2x2x1
jax: 0.10.0
libtpu: 0.0.40
codegen_flags: <defaults>
</compile_context>

<pallas_src>
import functools

import jax
import jax.numpy as jnp
from jax.experimental import pallas as pl
from jax.experimental.pallas import tpu as pltpu


def _ffn_kernel(x_ref, w1_ref, b1_ref, w2_ref, b2_ref, o_ref, acc_ref):
    # x_ref : (tm, Dp)   current M tile (block index constant along F axis)
    # w1_ref: (Dp, tf)   F-tile of the first projection (streamed)
    # b1_ref: (1, tf)
    # w2_ref: (tf, Dp)   F-tile of the second projection (streamed)
    # b2_ref: (1, Dp)
    # o_ref : (tm, Dp)   output tile (written on the last F step)
    # acc_ref:(tm, Dp)   f32 accumulator scratch
    k = pl.program_id(1)

    @pl.when(k == 0)
    def _init():
        acc_ref[...] = jnp.zeros_like(acc_ref)

    # First projection for this F tile + bias + GELU (f32 MXU accumulation).
    h = jnp.dot(x_ref[...], w1_ref[...], preferred_element_type=jnp.float32)
    h = jax.nn.gelu(h + b1_ref[...].astype(jnp.float32))

    # Partial second projection, accumulated across F tiles.
    acc_ref[...] += jnp.dot(h.astype(w2_ref.dtype), w2_ref[...],
                            preferred_element_type=jnp.float32)

    @pl.when(k == pl.num_programs(1) - 1)
    def _finalize():
        o_ref[...] = (acc_ref[...] + b2_ref[...].astype(jnp.float32)
                      ).astype(o_ref.dtype)


def _round_up(x, m):
    return (x + m - 1) // m * m


@functools.partial(jax.jit, static_argnames=("tile_m", "tile_f"))
def feed_forward_network(x, w1, b1, w2, b2, *, tile_m=256, tile_f=512):
    """x: (M, D) token-major activations. Returns (M, D) = GELU(x@W1+b1)@W2+b2."""
    M, D = x.shape
    F = w1.shape[1]
    out_dtype = x.dtype

    # Pre-cast params once in the wrapper so the kernel never casts MXU operands.
    w1 = w1.astype(x.dtype)
    b1 = b1.astype(x.dtype)
    w2 = w2.astype(x.dtype)
    b2 = b2.astype(x.dtype)

    # Tile sizes: sublane granularity depends on dtype width, lanes need 128.
    sub = 16 if x.dtype.itemsize == 2 else 8
    tm = max(sub, _round_up(min(tile_m, _round_up(M, sub)), sub))
    tf = max(128, _round_up(min(tile_f, _round_up(F, 128)), 128))

    Mp = _round_up(M, tm)
    Dp = _round_up(D, 128)
    Fp = _round_up(F, tf)

    # Zero-pad to lane/sublane-dense shapes.  Padding contributes exactly zero
    # (GELU(0) == 0 and padded weight rows/cols are zero); sliced off afterward.
    xp = jnp.pad(x, ((0, Mp - M), (0, Dp - D)))
    w1p = jnp.pad(w1, ((0, Dp - D), (0, Fp - F)))
    b1p = jnp.pad(b1, (0, Fp - F)).reshape(1, Fp)
    w2p = jnp.pad(w2, ((0, Fp - F), (0, Dp - D)))
    b2p = jnp.pad(b2, (0, Dp - D)).reshape(1, Dp)

    grid = (Mp // tm, Fp // tf)

    # VMEM budget: double-buffered streamed blocks + f32 accumulator, with 2x
    # headroom; clamped so it also fits under v7x's 64 MiB physical VMEM.
    itm = xp.dtype.itemsize
    working_set = (
        2 * tm * Dp * itm                       # x tile (double-buffered)
        + 2 * tm * Dp * out_dtype.itemsize      # output tile
        + 2 * (Dp * tf + tf * Dp) * itm         # streamed W1 / W2 tiles
        + 2 * (tf + Dp) * itm                   # biases
        + tm * Dp * 4                           # f32 accumulator scratch
    )
    vmem_limit = int(min(max(2 * working_set + (2 << 20), 16 << 20), 56 << 20))

    cost = pl.CostEstimate(
        flops=4 * Mp * Dp * Fp,                 # two matmuls: 2*M*D*F each
        transcendentals=Mp * Fp,                # GELU
        bytes_accessed=(xp.size * itm + w1p.size * itm + w2p.size * itm
                        + b1p.size * itm + b2p.size * itm
                        + Mp * Dp * out_dtype.itemsize),
    )

    # TODO(synk): constant-index blocks (b2, and x along the F axis) could be
    # single-buffered via pipeline_mode=pl.Buffered(1); left at the default to
    # keep pipelining of the next M tile.
    out = pl.pallas_call(
        _ffn_kernel,
        out_shape=jax.ShapeDtypeStruct((Mp, Dp), out_dtype),
        grid_spec=pltpu.PrefetchScalarGridSpec(
            num_scalar_prefetch=0,
            grid=grid,
            in_specs=[
                pl.BlockSpec((tm, Dp), lambda i, k: (i, 0)),   # x tile
                pl.BlockSpec((Dp, tf), lambda i, k: (0, k)),   # W1 F-tile
                pl.BlockSpec((1, tf), lambda i, k: (0, k)),    # b1 F-tile
                pl.BlockSpec((tf, Dp), lambda i, k: (k, 0)),   # W2 F-tile
                pl.BlockSpec((1, Dp), lambda i, k: (0, 0)),    # b2
            ],
            out_specs=pl.BlockSpec((tm, Dp), lambda i, k: (i, 0)),
            scratch_shapes=[pltpu.VMEM((tm, Dp), jnp.float32)],
        ),
        compiler_params=pltpu.CompilerParams(
            dimension_semantics=("parallel", "arbitrary"),
            vmem_limit_bytes=vmem_limit,
        ),
        cost_estimate=cost,
    )(xp, w1p, b1p, w2p, b2p)

    return out[:M, :D]


def _reference(x, w1, b1, w2, b2):
    h = jax.nn.gelu(x.astype(jnp.float32) @ w1.astype(jnp.float32)
                    + b1.astype(jnp.float32))
    return (h @ w2.astype(jnp.float32) + b2.astype(jnp.float32)).astype(x.dtype)


if __name__ == "__main__":
    batch, seq, hidden, ffn_hidden = 2, 8, 32, 64

    key = jax.random.PRNGKey(0)
    k_x, k_w1, k_b1, k_w2, k_b2 = jax.random.split(key, 5)

    # Deterministic synthetic parameters (module stub gives no checkpoint).
    x = jax.random.normal(k_x, (batch, seq, hidden), dtype=jnp.float32)
    w1 = jax.random.normal(k_w1, (hidden, ffn_hidden), dtype=jnp.float32) * 0.05
    b1 = jax.random.normal(k_b1, (ffn_hidden,), dtype=jnp.float32) * 0.01
    w2 = jax.random.normal(k_w2, (ffn_hidden, hidden), dtype=jnp.float32) * 0.05
    b2 = jax.random.normal(k_b2, (hidden,), dtype=jnp.float32) * 0.01

    x_2d = x.reshape(batch * seq, hidden)          # (M, D) token-major
    out_2d = feed_forward_network(x_2d, w1, b1, w2, b2)
    out = out_2d.reshape(batch, seq, hidden)
    jax.block_until_ready(out)

    ref = _reference(x_2d, w1, b1, w2, b2).reshape(batch, seq, hidden)
    assert jnp.allclose(out, ref, atol=1e-5, rtol=1e-5), "mismatch vs reference"

    # TODO(synk): reference module body was empty; implemented the standard
    # Linear -> GELU -> Linear FFN used by Equiformer's FeedForwardNetwork.
    print("KERNEL_OK")
</pallas_src>

<mosaic_0001>
module attributes {stable_mosaic.version = 11 : i64} {
  func.func @_ffn_kernel(%arg0: i32, %arg1: i32, %arg2: memref<16x128xf32, #tpu.memory_space<vmem>>, %arg3: memref<128x128xf32, #tpu.memory_space<vmem>>, %arg4: memref<1x128xf32, #tpu.memory_space<vmem>>, %arg5: memref<128x128xf32, #tpu.memory_space<vmem>>, %arg6: memref<1x128xf32, #tpu.memory_space<vmem>>, %arg7: memref<16x128xf32, #tpu.memory_space<vmem>>, %arg8: memref<16x128xf32, #tpu.memory_space<vmem>>) attributes {dimension_semantics = [#tpu.dimension_semantics<parallel>, #tpu.dimension_semantics<arbitrary>], iteration_bounds = array<i64: 1, 1>, scalar_prefetch = 0 : i64, scratch_operands = 1 : i64, tpu.core_type = #tpu.core_type<tc>, window_params = [{transform_indices = @transform_0, window_bounds = array<i64: 16, 128>}, {transform_indices = @transform_1, window_bounds = array<i64: 128, 128>}, {transform_indices = @transform_2, window_bounds = array<i64: 1, 128>}, {transform_indices = @transform_3, window_bounds = array<i64: 128, 128>}, {pipeline_mode = #tpu.pipeline_mode<synchronous>, transform_indices = @transform_4, window_bounds = array<i64: 1, 128>}, {transform_indices = @transform_5, window_bounds = array<i64: 16, 128>}]} {
    %c0_i32 = arith.constant 0 : i32
    %0 = arith.cmpi eq, %arg1, %c0_i32 : i32
    %1 = arith.extui %0 : i1 to i32
    %c0_i32_0 = arith.constant 0 : i32
    %2 = arith.cmpi ne, %1, %c0_i32_0 : i32
    scf.if %2 {
      %cst_19 = arith.constant 0.000000e+00 : f32
      %30 = vector.broadcast %cst_19 : f32 to vector<16x128xf32>
      %c0_20 = arith.constant 0 : index
      %c0_21 = arith.constant 0 : index
      %31 = vector.load %arg8[%c0_20, %c0_21] : memref<16x128xf32, #tpu.memory_space<vmem>>, vector<16x128xf32>
      tpu.vector_store %arg8[%c0_20, %c0_21], %30 {strides = array<i32>} : memref<16x128xf32, #tpu.memory_space<vmem>>, vector<16x128xf32>,
    } else {
    }
    %c0 = arith.constant 0 : index
    %c0_1 = arith.constant 0 : index
    %3 = vector.load %arg2[%c0, %c0_1] : memref<16x128xf32, #tpu.memory_space<vmem>>, vector<16x128xf32>
    %c0_2 = arith.constant 0 : index
    %c0_3 = arith.constant 0 : index
    %4 = vector.load %arg3[%c0_2, %c0_3] : memref<128x128xf32, #tpu.memory_space<vmem>>, vector<128x128xf32>
    %cst = arith.constant dense<0.000000e+00> : vector<16x128xf32>
    %5 = tpu.matmul %3, %4, %cst {dimension_numbers = #tpu.dot_dimension_numbers<[1], [0], [0], [1], [0, 0, 1, 1], [], []>} : vector<16x128xf32>, vector<128x128xf32>, vector<16x128xf32> -> vector<16x128xf32>
    %c0_4 = arith.constant 0 : index
    %c0_5 = arith.constant 0 : index
    %6 = vector.load %arg4[%c0_4, %c0_5] : memref<1x128xf32, #tpu.memory_space<vmem>>, vector<1x128xf32>
    %7 = vector.broadcast %6 : vector<1x128xf32> to vector<16x128xf32>
    %8 = arith.addf %5, %7 : vector<16x128xf32>
    %9 = arith.mulf %8, %8 : vector<16x128xf32>
    %10 = arith.mulf %8, %9 : vector<16x128xf32>
    %cst_6 = arith.constant 4.471500e-02 : f32
    %11 = vector.broadcast %cst_6 : f32 to vector<16x128xf32>
    %12 = arith.mulf %11, %10 : vector<16x128xf32>
    %13 = arith.addf %8, %12 : vector<16x128xf32>
    %cst_7 = arith.constant 0.797884583 : f32
    %14 = vector.broadcast %cst_7 : f32 to vector<16x128xf32>
    %15 = arith.mulf %14, %13 : vector<16x128xf32>
    %16 = math.tanh %15 : vector<16x128xf32>
    %cst_8 = arith.constant 1.000000e+00 : f32
    %17 = vector.broadcast %cst_8 : f32 to vector<16x128xf32>
    %18 = arith.addf %17, %16 : vector<16x128xf32>
    %cst_9 = arith.constant 5.000000e-01 : f32
    %19 = vector.broadcast %cst_9 : f32 to vector<16x128xf32>
    %20 = arith.mulf %19, %18 : vector<16x128xf32>
    %21 = arith.mulf %8, %20 : vector<16x128xf32>
    %c0_10 = arith.constant 0 : index
    %c0_11 = arith.constant 0 : index
    %22 = vector.load %arg8[%c0_10, %c0_11] : memref<16x128xf32, #tpu.memory_space<vmem>>, vector<16x128xf32>
    %c0_12 = arith.constant 0 : index
    %c0_13 = arith.constant 0 : index
    %23 = vector.load %arg5[%c0_12, %c0_13] : memref<128x128xf32, #tpu.memory_space<vmem>>, vector<128x128xf32>
    %cst_14 = arith.constant dense<0.000000e+00> : vector<16x128xf32>
    %24 = tpu.matmul %21, %23, %cst_14 {dimension_numbers = #tpu.dot_dimension_numbers<[1], [0], [0], [1], [0, 0, 1, 1], [], []>} : vector<16x128xf32>, vector<128x128xf32>, vector<16x128xf32> -> vector<16x128xf32>
    %25 = arith.addf %22, %24 : vector<16x128xf32>
    %c0_15 = arith.constant 0 : index
    %c0_16 = arith.constant 0 : index
    %26 = vector.load %arg8[%c0_15, %c0_16] : memref<16x128xf32, #tpu.memory_space<vmem>>, vector<16x128xf32>
    tpu.vector_store %arg8[%c0_15, %c0_16], %25 {strides = array<i32>} : memref<16x128xf32, #tpu.memory_space<vmem>>, vector<16x128xf32>,
    %c0_i32_17 = arith.constant 0 : i32
    %27 = arith.cmpi eq, %arg1, %c0_i32_17 : i32
    %28 = arith.extui %27 : i1 to i32
    %c0_i32_18 = arith.constant 0 : i32
    %29 = arith.cmpi ne, %28, %c0_i32_18 : i32
    scf.if %29 {
      %c0_19 = arith.constant 0 : index
      %c0_20 = arith.constant 0 : index
      %30 = vector.load %arg8[%c0_19, %c0_20] : memref<16x128xf32, #tpu.memory_space<vmem>>, vector<16x128xf32>
      %c0_21 = arith.constant 0 : index
      %c0_22 = arith.constant 0 : index
      %31 = vector.load %arg6[%c0_21, %c0_22] : memref<1x128xf32, #tpu.memory_space<vmem>>, vector<1x128xf32>
      %32 = vector.broadcast %31 : vector<1x128xf32> to vector<16x128xf32>
      %33 = arith.addf %30, %32 : vector<16x128xf32>
      %c0_23 = arith.constant 0 : index
      %c0_24 = arith.constant 0 : index
      %34 = vector.load %arg7[%c0_23, %c0_24] : memref<16x128xf32, #tpu.memory_space<vmem>>, vector<16x128xf32>
      tpu.vector_store %arg7[%c0_23, %c0_24], %33 {strides = array<i32>} : memref<16x128xf32, #tpu.memory_space<vmem>>, vector<16x128xf32>,
    } else {
    }
    return
  }
  func.func @transform_0(%arg0: i32, %arg1: i32) -> (i32, i32) {
    %c0_i32 = arith.constant 0 : i32
    %c0_i32_0 = arith.constant 0 : i32
    return %arg0, %c0_i32 : i32, i32
  }
  func.func @transform_1(%arg0: i32, %arg1: i32) -> (i32, i32) {
    %c0_i32 = arith.constant 0 : i32
    %c0_i32_0 = arith.constant 0 : i32
    return %c0_i32, %arg1 : i32, i32
  }
  func.func @transform_2(%arg0: i32, %arg1: i32) -> (i32, i32) {
    %c0_i32 = arith.constant 0 : i32
    %c0_i32_0 = arith.constant 0 : i32
    return %c0_i32, %arg1 : i32, i32
  }
  func.func @transform_3(%arg0: i32, %arg1: i32) -> (i32, i32) {
    %c0_i32 = arith.constant 0 : i32
    %c0_i32_0 = arith.constant 0 : i32
    return %arg1, %c0_i32 : i32, i32
  }
  func.func @transform_4(%arg0: i32, %arg1: i32) -> (i32, i32) {
    %c0_i32 = arith.constant 0 : i32
    %c0_i32_0 = arith.constant 0 : i32
    %c0_i32_1 = arith.constant 0 : i32
    return %c0_i32, %c0_i32_0 : i32, i32
  }
  func.func @transform_5(%arg0: i32, %arg1: i32) -> (i32, i32) {
    %c0_i32 = arith.constant 0 : i32
    %c0_i32_0 = arith.constant 0 : i32
    return %arg0, %c0_i32 : i32, i32
  }
}

</mosaic_0001>

<llo_original>
// kernel: feed_forward_network.1
$region0: #{feed_forward_network.1}
  #allocation0 [shape = 'u32[]', space=smem, size = 0x4, offset = 0x4, fixed_abs, tag = 'smem constant byte address 0x4 - core index']
  #allocation1 [shape = 'u32[144,128]{1,0:T(1,128)}', space=vmem, size = 0x12000, scoped, tag = 'internal scratch']
  #allocation2 [shape = 'f32[16,128]{1,0:T(8,128)}', space=vmem, size = 0x2000, scoped, tag = 'scratch operand']
  %s0 = inlined_call_operand.vmem [shape: f32[16,128], index: 0, kind: input, shape index: {}]
  %s1 = inlined_call_operand.vmem [shape: f32[128,128], index: 1, kind: input, shape index: {}]
  %s2 = inlined_call_operand.vmem [shape: f32[1,128], index: 2, kind: input, shape index: {}]
  %s3 = inlined_call_operand.vmem [shape: f32[128,128], index: 3, kind: input, shape index: {}]
  %s4 = inlined_call_operand.vmem [shape: f32[1,128], index: 4, kind: input, shape index: {}]
  %s5 = inlined_call_operand.hbm [shape: f32[16,128], index: 5, kind: output, shape index: {}]
  %s6 = sld [smem:[#allocation0]]
  $region38: #{feed_forward_network.1} parent=0
    _
  %s8 = ssub.s32 1, %s6
  %s9 = scalar_select 0, %s8, %s6
  $region1: #{feed_forward_network.1} parent=0
    #allocation3 [shape = 'u8[8192]{0}', space=vmem, size = 0x2000, scoped, tag = 'output window, operand 0, single buffered']
    #allocation4 [shape = 's32[1]{0}', space=sflag, size = 0x4, scoped, tag = 'scoped memory for feed_forward_network.1']
    %10 = vsyncpa [#allocation4], 0
    // Predicated region
    $region2: #{feed_forward_network.1} parent=1 // pred_check
      _
    $region3: #{feed_forward_network.1} parent=1 // pred_check_branch
      %12 = sbr.rel (0) target = $region5
    $region4: #{feed_forward_network.1} parent=1 // pred_region
      _
    $region5: #{feed_forward_network.1} parent=1 // pred_fallthru
      _
    // Predicated region
    $region6: #{feed_forward_network.1} parent=1 // pred_check
      _
    $region7: #{feed_forward_network.1} parent=1 // pred_check_branch
      %14 = sbr.rel (0) target = $region9
    $region8: #{feed_forward_network.1} parent=1 // pred_region
      _
    $region9: #{feed_forward_network.1} parent=1 // pred_fallthru
      _
    // Predicated region
    $region10: #{feed_forward_network.1} parent=1 // pred_check
      _
    $region11: #{feed_forward_network.1} parent=1 // pred_check_branch
      %16 = sbr.rel (0) target = $region13
    $region12: #{feed_forward_network.1} parent=1 // pred_region
      _
    $region13: #{feed_forward_network.1} parent=1 // pred_fallthru
      _
    // Predicated region
    $region14: #{feed_forward_network.1} parent=1 // pred_check
      _
    $region15: #{feed_forward_network.1} parent=1 // pred_check_branch
      %18 = sbr.rel (0) target = $region17
    $region16: #{feed_forward_network.1} parent=1 // pred_region
      _
    $region17: #{feed_forward_network.1} parent=1 // pred_fallthru
      _
    // Predicated region
    $region18: #{feed_forward_network.1} parent=1 // pred_check
      _
    $region19: #{feed_forward_network.1} parent=1 // pred_check_branch
      %20 = sbr.rel (0) target = $region21
    $region20: #{feed_forward_network.1} parent=1 // pred_region
      _
    $region21: #{feed_forward_network.1} parent=1 // pred_fallthru
      _
    %p21 = scmp.eq.s32.totalorder 0, 0
    // Predicated region
    $region22: #{feed_forward_network.1} parent=1 // pred_check
      %p22 = pneg %p21
    $region23: #{feed_forward_network.1} parent=1 // pred_check_branch
      %24 = sbr.rel (%p22) target = $region25
    $region24: #{feed_forward_network.1} parent=1 // pred_region
      %25 = vst [vmem:[#allocation2] sm:$0xff] 0.0
      %26 = vst [vmem:[#allocation2 + $0x8] sm:$0xff] 0.0
    $region25: #{feed_forward_network.1} parent=1 // pred_fallthru
      _
    %v27 = vld [vmem:[%s0] sm:$0xff]
    %v28 = vld [vmem:[%s0 + $0x8] sm:$0xff]
    %v29 = vld [vmem:[%s1] sm:$0xff]
    %v30 = vld [vmem:[%s1 + $0x8] sm:$0xff]
    %v31 = vld [vmem:[%s1 + $0x10] sm:$0xff]
    %v32 = vld [vmem:[%s1 + $0x18] sm:$0xff]
    %v33 = vld [vmem:[%s1 + $0x20] sm:$0xff]
    %v34 = vld [vmem:[%s1 + $0x28] sm:$0xff]
    %v35 = vld [vmem:[%s1 + $0x30] sm:$0xff]
    %v36 = vld [vmem:[%s1 + $0x38] sm:$0xff]
    %v37 = vld [vmem:[%s1 + $0x40] sm:$0xff]
    %v38 = vld [vmem:[%s1 + $0x48] sm:$0xff]
    %v39 = vld [vmem:[%s1 + $0x50] sm:$0xff]
    %v40 = vld [vmem:[%s1 + $0x58] sm:$0xff]
    %v41 = vld [vmem:[%s1 + $0x60] sm:$0xff]
    %v42 = vld [vmem:[%s1 + $0x68] sm:$0xff]
    %v43 = vld [vmem:[%s1 + $0x70] sm:$0xff]
    %v44 = vld [vmem:[%s1 + $0x78] sm:$0xff]
    %v45 = vld [vmem:[%s2] sm:$0x1]
    %v47 = vlaneseq
    %v48 = vshrl.u32 %v47, 7
    %v49 = vsub.s32 0, %v48
    %v50 = vrot.slane %v45, %v49
    %52 = vmatprep.subr.mxu0 0.0
    %53 = vmatpush1.msra.mxu0 %v44
    %54 = vmatprep.subr.mxu0 0.0
    %55 = vmatpush1.msra.mxu0 %v43
    %56 = vmatprep.subr.mxu0 0.0
    %57 = vmatpush1.msra.mxu0 %v42
    %58 = vmatprep.subr.mxu0 0.0
    %59 = vmatpush1.msra.mxu0 %v41
    %60 = vmatprep.subr.mxu0 0.0
    %61 = vmatpush1.msra.mxu0 %v40
    %62 = vmatprep.subr.mxu0 0.0
    %63 = vmatpush1.msra.mxu0 %v39
    %64 = vmatprep.subr.mxu0 0.0
    %65 = vmatpush1.msra.mxu0 %v38
    %66 = vmatprep.subr.mxu0 0.0
    %67 = vmatpush1.msra.mxu0 %v37
    %68 = vmatprep.subr.mxu0 0.0
    %69 = vmatpush1.msra.mxu0 %v36
    %70 = vmatprep.subr.mxu0 0.0
    %71 = vmatpush1.msra.mxu0 %v35
    %72 = vmatprep.subr.mxu0 0.0
    %73 = vmatpush1.msra.mxu0 %v34
    %74 = vmatprep.subr.mxu0 0.0
    %75 = vmatpush1.msra.mxu0 %v33
    %76 = vmatprep.subr.mxu0 0.0
    %77 = vmatpush1.msra.mxu0 %v32
    %78 = vmatprep.subr.mxu0 0.0
    %79 = vmatpush1.msra.mxu0 %v31
    %80 = vmatprep.subr.mxu0 0.0
    %81 = vmatpush1.msra.mxu0 %v30
    %82 = vmatprep.subr.mxu0 0.0
    %83 = vmatpush1.msra.mxu0 %v29
    %84 = vmatprep.subr.mxu0 0.0
    %85 = vmatpush2.msra.mxu0 0.0
    %86 = vmatprep.subr.mxu0 0.0
    %87 = vmatpush2.msra.mxu0 0.0
    %88 = vmatprep.subr.mxu0 0.0
    %89 = vmatpush2.msra.mxu0 0.0
    %90 = vmatprep.subr.mxu0 0.0
    %91 = vmatpush2.msra.mxu0 0.0
    %92 = vmatprep.subr.mxu0 0.0
    %93 = vmatpush2.msra.mxu0 0.0
    %94 = vmatprep.subr.mxu0 0.0
    %95 = vmatpush2.msra.mxu0 0.0
    %96 = vmatprep.subr.mxu0 0.0
    %97 = vmatpush2.msra.mxu0 0.0
    %98 = vmatprep.subr.mxu0 0.0
    %99 = vmatpush2.msra.mxu0 0.0
    %100 = vmatprep.subr.mxu0 0.0
    %101 = vmatpush2.msra.mxu0 0.0
    %102 = vmatprep.subr.mxu0 0.0
    %103 = vmatpush2.msra.mxu0 0.0
    %104 = vmatprep.subr.mxu0 0.0
    %105 = vmatpush2.msra.mxu0 0.0
    %106 = vmatprep.subr.mxu0 0.0
    %107 = vmatpush2.msra.mxu0 0.0
    %108 = vmatprep.subr.mxu0 0.0
    %109 = vmatpush2.msra.mxu0 0.0
    %110 = vmatprep.subr.mxu0 0.0
    %111 = vmatpush2.msra.mxu0 0.0
    %112 = vmatprep.subr.mxu0 0.0
    %113 = vmatpush2.msra.mxu0 0.0
    %114 = vmatprep.subr.mxu0 0.0
    %115 = vmatpush2.msra.mxu0 0.0
    %116 = vmatprep.mubr.f32.mxu0 0.0
    %117 = vmatmul.mubr.f32.gmra.mxu0 %v27
    %v118 = vpop.f32.mrf.mxu0
    %v119 = vadd.f32 %v50, %v118
    %v120 = vpop.f32.mrf.mxu0
    %121 = vmatprep.mubr.f32.mxu0 0.0
    %122 = vmatmul.mubr.f32.gmra.mxu0 %v28
    %v123 = vpop.f32.mrf.mxu0
    %v124 = vadd.f32 %v50, %v123
    %v125 = vpop.f32.mrf.mxu0
    %126 = vdwg.mxu0
    %v127 = vmul.f32 %v119, %v119
    %v128 = vmul.f32 %v124, %v124
    %v129 = vmul.f32 %v119, %v127
    %v130 = vmul.f32 %v124, %v128
    %v131 = vmul.f32 %v129, 0.044715
    %v132 = vmul.f32 %v130, 0.044715
    %v133 = vadd.f32 %v119, %v131
    %v134 = vadd.f32 %v124, %v132
    %v135 = vmul.f32 %v133, 0.7978846
    %v136 = vmul.f32 %v134, 0.7978846
    %v137 = vtanh.pop %v135
    %v138 = vtanh.pop %v136
    %v139 = vadd.f32 %v137, 1.0
    %v140 = vadd.f32 %v138, 1.0
    %v141 = vmul.f32 %v139, 0.5
    %v142 = vmul.f32 %v140, 0.5
    %v143 = vmul.f32 %v119, %v141
    %v144 = vmul.f32 %v124, %v142
    %v145 = vld [vmem:[#allocation2] sm:$0xff]
    %v146 = vld [vmem:[#allocation2 + $0x8] sm:$0xff]
    %v147 = vld [vmem:[%s3] sm:$0xff]
    %v148 = vld [vmem:[%s3 + $0x8] sm:$0xff]
    %v149 = vld [vmem:[%s3 + $0x10] sm:$0xff]
    %v150 = vld [vmem:[%s3 + $0x18] sm:$0xff]
    %v151 = vld [vmem:[%s3 + $0x20] sm:$0xff]
    %v152 = vld [vmem:[%s3 + $0x28] sm:$0xff]
    %v153 = vld [vmem:[%s3 + $0x30] sm:$0xff]
    %v154 = vld [vmem:[%s3 + $0x38] sm:$0xff]
    %v155 = vld [vmem:[%s3 + $0x40] sm:$0xff]
    %v156 = vld [vmem:[%s3 + $0x48] sm:$0xff]
    %v157 = vld [vmem:[%s3 + $0x50] sm:$0xff]
    %v158 = vld [vmem:[%s3 + $0x58] sm:$0xff]
    %v159 = vld [vmem:[%s3 + $0x60] sm:$0xff]
    %v160 = vld [vmem:[%s3 + $0x68] sm:$0xff]
    %v161 = vld [vmem:[%s3 + $0x70] sm:$0xff]
    %v162 = vld [vmem:[%s3 + $0x78] sm:$0xff]
    %163 = vmatprep.subr.mxu0 0.0
    %164 = vmatpush1.msra.mxu0 %v162
    %165 = vmatprep.subr.mxu0 0.0
    %166 = vmatpush1.msra.mxu0 %v161
    %167 = vmatprep.subr.mxu0 0.0
    %168 = vmatpush1.msra.mxu0 %v160
    %169 = vmatprep.subr.mxu0 0.0
    %170 = vmatpush1.msra.mxu0 %v159
    %171 = vmatprep.subr.mxu0 0.0
    %172 = vmatpush1.msra.mxu0 %v158
    %173 = vmatprep.subr.mxu0 0.0
    %174 = vmatpush1.msra.mxu0 %v157
    %175 = vmatprep.subr.mxu0 0.0
    %176 = vmatpush1.msra.mxu0 %v156
    %177 = vmatprep.subr.mxu0 0.0
    %178 = vmatpush1.msra.mxu0 %v155
    %179 = vmatprep.subr.mxu0 0.0
    %180 = vmatpush1.msra.mxu0 %v154
    %181 = vmatprep.subr.mxu0 0.0
    %182 = vmatpush1.msra.mxu0 %v153
    %183 = vmatprep.subr.mxu0 0.0
    %184 = vmatpush1.msra.mxu0 %v152
    %185 = vmatprep.subr.mxu0 0.0
    %186 = vmatpush1.msra.mxu0 %v151
    %187 = vmatprep.subr.mxu0 0.0
    %188 = vmatpush1.msra.mxu0 %v150
    %189 = vmatprep.subr.mxu0 0.0
    %190 = vmatpush1.msra.mxu0 %v149
    %191 = vmatprep.subr.mxu0 0.0
    %192 = vmatpush1.msra.mxu0 %v148
    %193 = vmatprep.subr.mxu0 0.0
    %194 = vmatpush1.msra.mxu0 %v147
    %195 = vmatprep.subr.mxu0 0.0
    %196 = vmatpush2.msra.mxu0 0.0
    %197 = vmatprep.subr.mxu0 0.0
    %198 = vmatpush2.msra.mxu0 0.0
    %199 = vmatprep.subr.mxu0 0.0
    %200 = vmatpush2.msra.mxu0 0.0
    %201 = vmatprep.subr.mxu0 0.0
    %202 = vmatpush2.msra.mxu0 0.0
    %203 = vmatprep.subr.mxu0 0.0
    %204 = vmatpush2.msra.mxu0 0.0
    %205 = vmatprep.subr.mxu0 0.0
    %206 = vmatpush2.msra.mxu0 0.0
    %207 = vmatprep.subr.mxu0 0.0
    %208 = vmatpush2.msra.mxu0 0.0
    %209 = vmatprep.subr.mxu0 0.0
    %210 = vmatpush2.msra.mxu0 0.0
    %211 = vmatprep.subr.mxu0 0.0
    %212 = vmatpush2.msra.mxu0 0.0
    %213 = vmatprep.subr.mxu0 0.0
    %214 = vmatpush2.msra.mxu0 0.0
    %215 = vmatprep.subr.mxu0 0.0
    %216 = vmatpush2.msra.mxu0 0.0
    %217 = vmatprep.subr.mxu0 0.0
    %218 = vmatpush2.msra.mxu0 0.0
    %219 = vmatprep.subr.mxu0 0.0
    %220 = vmatpush2.msra.mxu0 0.0
    %221 = vmatprep.subr.mxu0 0.0
    %222 = vmatpush2.msra.mxu0 0.0
    %223 = vmatprep.subr.mxu0 0.0
    %224 = vmatpush2.msra.mxu0 0.0
    %225 = vmatprep.subr.mxu0 0.0
    %226 = vmatpush2.msra.mxu0 0.0
    %227 = vmatprep.mubr.f32.mxu0 0.0
    %228 = vmatmul.mubr.f32.gmra.mxu0 %v143
    %v229 = vpop.f32.mrf.mxu0
    %v230 = vadd.f32 0.0, %v229
    %v231 = vpop.f32.mrf.mxu0
    %232 = vmatprep.mubr.f32.mxu0 0.0
    %233 = vmatmul.mubr.f32.gmra.mxu0 %v144
    %v234 = vpop.f32.mrf.mxu0
    %v235 = vadd.f32 0.0, %v234
    %v236 = vpop.f32.mrf.mxu0
    %237 = vdwg.mxu0
    %v238 = vadd.f32 %v145, %v230
    %v239 = vadd.f32 %v146, %v235
    %240 = vst [vmem:[#allocation2] sm:$0xff] %v238
    %241 = vst [vmem:[#allocation2 + $0x8] sm:$0xff] %v239
    // Predicated region
    $region26: #{feed_forward_network.1} parent=1 // pred_check
      %p242 = pneg %p21
    $region27: #{feed_forward_network.1} parent=1 // pred_check_branch
      %244 = sbr.rel (%p242) target = $region29
    $region28: #{feed_forward_network.1} parent=1 // pred_region
      %v245 = vld [vmem:[#allocation2] sm:$0xff]
      %v246 = vld [vmem:[#allocation2 + $0x8] sm:$0xff]
      %v247 = vld [vmem:[%s4] sm:$0x1]
      %v249 = vlaneseq
      %v250 = vshrl.u32 %v249, 7
      %v251 = vsub.s32 0, %v250
      %v252 = vrot.slane %v247, %v251
      %v254 = vadd.f32 %v245, %v252
      %v255 = vadd.f32 %v246, %v252
      %256 = vst [vmem:[#allocation3] sm:$0xff] %v254
      %257 = vst [vmem:[#allocation3 + $0x8] sm:$0xff] %v255
    $region29: #{feed_forward_network.1} parent=1 // pred_fallthru
      _
    // Predicated region
    $region30: #{feed_forward_network.1} parent=1 // pred_check
      _
    $region31: #{feed_forward_network.1} parent=1 // pred_check_branch
      %259 = sbr.rel (0) target = $region33
    $region32: #{feed_forward_network.1} parent=1 // pred_region
      %s261 = ssub.s32 256, 256
      %262 = vsyncadd [#allocation4], %s261
      %s263 = sshll.u32 [#allocation3], 4
      %s264 = int_to_ptr.vmem [resolvable:$true] %s263
      %269 = dma.vmem_to_hbm [thread:$0]  %s264, 256, %s5, [#allocation4], 128, 128, 8
    $region33: #{feed_forward_network.1} parent=1 // pred_fallthru
      _
    // Predicated region
    $region34: #{feed_forward_network.1} parent=1 // pred_check
      _
    $region35: #{feed_forward_network.1} parent=1 // pred_check_branch
      %271 = sbr.rel (0) target = $region37
    $region36: #{feed_forward_network.1} parent=1 // pred_region
      %272 = dma.done [#allocation4], 256
    $region37: #{feed_forward_network.1} parent=1 // pred_fallthru
      _
    %273 = vsyncpa [#allocation4], 1

</llo_original>
